<compile_context>
chip_gen: v6e
topology: v6e:2x2x1
jax: 0.10.0
libtpu: 0.0.40
codegen_flags: <defaults>
</compile_context>

<pallas_src>
import functools

import jax
import jax.numpy as jnp
from jax.experimental import pallas as pl
from jax.experimental.pallas import tpu as pltpu


def _round_up(n, m):
    return ((n + m - 1) // m) * m


def _choose_batch_tiling(B, max_tm=256, align=16):
    """Batch tile (multiple of 16 for bf16 sublane packing) + padded batch.

    Prefers >=2 tiles on the (parallel) batch axis (v7x megacore), then minimal
    padding, then the largest tile."""
    B_a = _round_up(B, align)
    best = None
    for tm in range(align, min(max_tm, B_a) + 1, align):
        B_pad = _round_up(B_a, tm)
        n_tiles = B_pad // tm
        key = (0 if (n_tiles >= 2 or B_a <= align) else 1, B_pad, -tm)
        if best is None or key < best[0]:
            best = (key, tm, B_pad)
    return best[1], best[2]


def _choose_feature_tiling(D, max_td=2048, align=128):
    """Feature tile (multiple of 128) + padded feature size.

    Minimizes padding first (ideally D_pad = round_up(D, 128)), then maximizes
    the tile to amortize the ~0.35 us fixed per-grid-step cost."""
    D_a = _round_up(D, align)
    min_td = align if D_a < 4096 else 512
    best = None
    for td in range(min_td, min(max_td, D_a) + 1, align):
        D_pad = _round_up(D_a, td)
        key = (D_pad, -td)
        if best is None or key < best[0]:
            best = (key, td, D_pad)
    return best[1], best[2]


# ---------------- encoder kernel: z = tanh(x @ We + be) ----------------
def _encoder_kernel(x_ref, we_ref, be_ref, z32_ref, zbf_ref, acc_ref, *, we_resident):
    # grid = (batch tiles, D reduction tiles); acc_ref is an f32 accumulator.
    k = pl.program_id(1)

    @pl.when(k == 0)
    def _():
        acc_ref[...] = jnp.zeros_like(acc_ref)

    td = x_ref.shape[1]
    if we_resident:
        # We is fully resident in VMEM (DMA'd once); slice the reduction chunk.
        off = pl.multiple_of(k * td, 128)
        w = we_ref[pl.ds(off, td), :]
    else:
        w = we_ref[...]

    # x arrives in its native dtype; cast to the MXU compute dtype in-kernel.
    acc_ref[...] += jnp.dot(x_ref[...].astype(w.dtype), w,
                            preferred_element_type=jnp.float32)

    @pl.when(k == pl.num_programs(1) - 1)
    def _():
        # tanh only after the FULL D contraction.
        z = jnp.tanh(acc_ref[...] + be_ref[...])
        z32_ref[...] = z.astype(z32_ref.dtype)   # returned latent (f32)
        zbf_ref[...] = z.astype(zbf_ref.dtype)   # feeds the decoder (bf16)


# ---------------- decoder kernel: r = z @ Wd + bd ----------------
def _decoder_kernel(z_ref, wd_ref, bd_ref, r_ref):
    r = jnp.dot(z_ref[...], wd_ref[...], preferred_element_type=jnp.float32)
    r_ref[...] = (r + bd_ref[...]).astype(r_ref.dtype)


@functools.partial(jax.jit, static_argnames=("compute_dtype",))
def aeim_forward(x_nchw, we, be, wd, bd, *, compute_dtype=jnp.bfloat16):
    """AEIMComputable.forward: returns (z, r) with r in NCHW."""
    B, C, H, W = x_nchw.shape
    D = C * H * W
    L = we.shape[1]

    # ---- padded, lane-dense on-device layout --------------------------------
    Lp = _round_up(L, 128)                    # latent padded to a full lane dim
    tm, B_pad = _choose_batch_tiling(B)       # batch tile (MXU M dim)
    td, D_pad = _choose_feature_tiling(D)     # feature tile (enc reduction / dec out)

    itemsize = jnp.dtype(compute_dtype).itemsize
    out_dtype = x_nchw.dtype

    # x stays in its native dtype (no padded bf16 materialization); padding is a
    # no-op when B, D are already aligned.  Zero padding keeps results exact.
    x_p = jnp.pad(x_nchw.reshape(B, D), ((0, B_pad - B), (0, D_pad - D)))
    we_p = jnp.pad(we.astype(compute_dtype), ((0, D_pad - D), (0, Lp - L)))
    be_p = jnp.pad(be.astype(jnp.float32).reshape(1, L), ((0, 0), (0, Lp - L)))
    wd_p = jnp.pad(wd.astype(compute_dtype), ((0, Lp - L), (0, D_pad - D)))
    bd_p = jnp.pad(bd.astype(jnp.float32).reshape(1, D), ((0, 0), (0, D_pad - D)))

    nb = B_pad // tm
    nd = D_pad // td

    # ---- encoder -------------------------------------------------------------
    # Keep We resident in VMEM (single DMA for the whole grid) when it fits a
    # conservative budget (<= 2 MiB raw, <= ~4 MiB with pipeline buffering, safe
    # even under the 16 MiB v5e scoped-VMEM default); otherwise stream per-k.
    we_resident = (D_pad * Lp * itemsize) <= (2 * 1024 * 1024)
    if we_resident:
        we_spec = pl.BlockSpec((D_pad, Lp), lambda i, k: (0, 0))
    else:
        we_spec = pl.BlockSpec((td, Lp), lambda i, k: (k, 0))

    x_bytes = B_pad * D_pad * x_p.dtype.itemsize
    we_bytes = D_pad * Lp * itemsize * (1 if we_resident else nb)
    enc_cost = pl.CostEstimate(
        flops=2 * B_pad * D_pad * Lp,
        transcendentals=B_pad * Lp,
        bytes_accessed=x_bytes + we_bytes + Lp * 4 + B_pad * Lp * (4 + itemsize),
    )
    z32_p, zbf_p = pl.pallas_call(
        functools.partial(_encoder_kernel, we_resident=we_resident),
        out_shape=(jax.ShapeDtypeStruct((B_pad, Lp), jnp.float32),
                   jax.ShapeDtypeStruct((B_pad, Lp), compute_dtype)),
        grid_spec=pltpu.PrefetchScalarGridSpec(
            num_scalar_prefetch=0,
            grid=(nb, nd),
            in_specs=[
                pl.BlockSpec((tm, td), lambda i, k: (i, k)),   # x tile (native dtype)
                we_spec,                                        # We: resident or per-k
                pl.BlockSpec((1, Lp), lambda i, k: (0, 0)),     # be (resident)
            ],
            out_specs=(
                pl.BlockSpec((tm, Lp), lambda i, k: (i, 0)),    # z f32 (accumulated)
                pl.BlockSpec((tm, Lp), lambda i, k: (i, 0)),    # z bf16 (for decoder)
            ),
            scratch_shapes=[pltpu.VMEM((tm, Lp), jnp.float32)],
        ),
        compiler_params=pltpu.CompilerParams(
            dimension_semantics=("parallel", "arbitrary")),
        cost_estimate=enc_cost,
    )(x_p, we_p, be_p)

    # ---- decoder -------------------------------------------------------------
    # Grid: D_out tiles OUTER, batch tiles INNER -> each Wd tile is DMA'd exactly
    # once; only the tiny bf16 z tile is re-streamed per D tile.
    dec_cost = pl.CostEstimate(
        flops=2 * B_pad * Lp * D_pad,
        transcendentals=0,
        bytes_accessed=(nd * B_pad * Lp * itemsize + Lp * D_pad * itemsize
                        + D_pad * 4
                        + B_pad * D_pad * jnp.dtype(out_dtype).itemsize),
    )
    r_p = pl.pallas_call(
        _decoder_kernel,
        out_shape=jax.ShapeDtypeStruct((B_pad, D_pad), out_dtype),
        grid_spec=pltpu.PrefetchScalarGridSpec(
            num_scalar_prefetch=0,
            grid=(nd, nb),
            in_specs=[
                pl.BlockSpec((tm, Lp), lambda j, i: (i, 0)),   # z tile (bf16, tiny)
                pl.BlockSpec((Lp, td), lambda j, i: (0, j)),   # Wd tile: outer axis only
                pl.BlockSpec((1, td), lambda j, i: (0, j)),    # bd slice per out tile
            ],
            out_specs=pl.BlockSpec((tm, td), lambda j, i: (i, j)),
        ),
        compiler_params=pltpu.CompilerParams(
            dimension_semantics=("parallel", "parallel")),
        cost_estimate=dec_cost,
    )(zbf_p, wd_p, bd_p)

    z = z32_p[:B, :L]
    r = r_p[:B, :D].reshape(B, C, H, W)
    return z, r


def preprocess(x):
    return x / 255.0


def unprocess(x):
    return x * 255.0


def _reference_forward(x_nchw, we, be, wd, bd, compute_dtype=jnp.bfloat16):
    """Plain-JAX reference using the same bf16-input / f32-accumulation recipe."""
    B, C, H, W = x_nchw.shape
    x_flat = x_nchw.reshape(B, -1).astype(compute_dtype)
    z = jnp.tanh(
        jnp.dot(x_flat, we.astype(compute_dtype),
                preferred_element_type=jnp.float32) + be.astype(jnp.float32)
    )
    r = (jnp.dot(z.astype(compute_dtype), wd.astype(compute_dtype),
                 preferred_element_type=jnp.float32) + bd.astype(jnp.float32))
    return z, r.reshape(B, C, H, W)


if __name__ == "__main__":
    B, C, H, W = 2, 4, 16, 16
    D = C * H * W
    LATENT = 32

    key = jax.random.PRNGKey(0)
    k_x, k_we, k_be, k_wd, k_bd = jax.random.split(key, 5)

    x = jax.random.uniform(k_x, (B, C, H, W), dtype=jnp.float32) * 255.0
    x = preprocess(x)  # typical usage; forward() itself does not preprocess

    we = jax.random.normal(k_we, (D, LATENT), dtype=jnp.float32) * (1.0 / jnp.sqrt(D))
    be = jax.random.normal(k_be, (LATENT,), dtype=jnp.float32) * 0.01
    wd = jax.random.normal(k_wd, (LATENT, D), dtype=jnp.float32) * (1.0 / jnp.sqrt(LATENT))
    bd = jax.random.normal(k_bd, (D,), dtype=jnp.float32) * 0.01

    z, r = aeim_forward(x, we, be, wd, bd)
    jax.block_until_ready((z, r))

    z_ref, r_ref = _reference_forward(x, we, be, wd, bd)
    assert z.shape == (B, LATENT) and r.shape == (B, C, H, W)
    # bf16 MXU inputs with f32 accumulation -> loosen tolerances vs. pure-f32 math.
    assert jnp.allclose(z, z_ref, atol=2e-2, rtol=2e-2), float(jnp.max(jnp.abs(z - z_ref)))
    assert jnp.allclose(r, r_ref, atol=2e-2, rtol=2e-2), float(jnp.max(jnp.abs(r - r_ref)))

    print("KERNEL_OK")
</pallas_src>

<mosaic_0001>
module attributes {stable_mosaic.version = 11 : i64} {
  func.func @_encoder_kernel(%arg0: i32, %arg1: i32, %arg2: memref<16x1024xf32, #tpu.memory_space<vmem>>, %arg3: memref<1024x128xbf16, #tpu.memory_space<vmem>>, %arg4: memref<1x128xf32, #tpu.memory_space<vmem>>, %arg5: memref<16x128xf32, #tpu.memory_space<vmem>>, %arg6: memref<16x128xbf16, #tpu.memory_space<vmem>>, %arg7: memref<16x128xf32, #tpu.memory_space<vmem>>) attributes {dimension_semantics = [#tpu.dimension_semantics<parallel>, #tpu.dimension_semantics<arbitrary>], iteration_bounds = array<i64: 1, 1>, scalar_prefetch = 0 : i64, scratch_operands = 1 : i64, tpu.core_type = #tpu.core_type<tc>, window_params = [{transform_indices = @transform_0, window_bounds = array<i64: 16, 1024>}, {pipeline_mode = #tpu.pipeline_mode<synchronous>, transform_indices = @transform_1, window_bounds = array<i64: 1024, 128>}, {pipeline_mode = #tpu.pipeline_mode<synchronous>, transform_indices = @transform_2, window_bounds = array<i64: 1, 128>}, {transform_indices = @transform_3, window_bounds = array<i64: 16, 128>}, {transform_indices = @transform_4, window_bounds = array<i64: 16, 128>}]} {
    %c0_i32 = arith.constant 0 : i32
    %0 = arith.cmpi eq, %arg1, %c0_i32 : i32
    %1 = arith.extui %0 : i1 to i32
    %c0_i32_0 = arith.constant 0 : i32
    %2 = arith.cmpi ne, %1, %c0_i32_0 : i32
    scf.if %2 {
      %cst_9 = arith.constant 0.000000e+00 : f32
      %16 = vector.broadcast %cst_9 : f32 to vector<16x128xf32>
      %c0_10 = arith.constant 0 : index
      %c0_11 = arith.constant 0 : index
      %17 = vector.load %arg7[%c0_10, %c0_11] : memref<16x128xf32, #tpu.memory_space<vmem>>, vector<16x128xf32>
      tpu.vector_store %arg7[%c0_10, %c0_11], %16 {strides = array<i32>} : memref<16x128xf32, #tpu.memory_space<vmem>>, vector<16x128xf32>,
    } else {
    }
    %c1024_i32 = arith.constant 1024 : i32
    %3 = arith.muli %arg1, %c1024_i32 : i32
    %4 = tpu.assume_multiple %3, 128 : i32
    %5 = arith.index_cast %4 : i32 to index
    %c0 = arith.constant 0 : index
    %6 = vector.load %arg3[%5, %c0] : memref<1024x128xbf16, #tpu.memory_space<vmem>>, vector<1024x128xbf16>
    %c0_1 = arith.constant 0 : index
    %c0_2 = arith.constant 0 : index
    %7 = vector.load %arg7[%c0_1, %c0_2] : memref<16x128xf32, #tpu.memory_space<vmem>>, vector<16x128xf32>
    %c0_3 = arith.constant 0 : index
    %c0_4 = arith.constant 0 : index
    %8 = vector.load %arg2[%c0_3, %c0_4] : memref<16x1024xf32, #tpu.memory_space<vmem>>, vector<16x1024xf32>
    %9 = arith.truncf %8 : vector<16x1024xf32> to vector<16x1024xbf16>
    %cst = arith.constant dense<0.000000e+00> : vector<16x128xf32>
    %10 = tpu.matmul %9, %6, %cst {dimension_numbers = #tpu.dot_dimension_numbers<[1], [0], [0], [1], [0, 0, 1, 1], [], []>} : vector<16x1024xbf16>, vector<1024x128xbf16>, vector<16x128xf32> -> vector<16x128xf32>
    %11 = arith.addf %7, %10 : vector<16x128xf32>
    %c0_5 = arith.constant 0 : index
    %c0_6 = arith.constant 0 : index
    %12 = vector.load %arg7[%c0_5, %c0_6] : memref<16x128xf32, #tpu.memory_space<vmem>>, vector<16x128xf32>
    tpu.vector_store %arg7[%c0_5, %c0_6], %11 {strides = array<i32>} : memref<16x128xf32, #tpu.memory_space<vmem>>, vector<16x128xf32>,
    %c0_i32_7 = arith.constant 0 : i32
    %13 = arith.cmpi eq, %arg1, %c0_i32_7 : i32
    %14 = arith.extui %13 : i1 to i32
    %c0_i32_8 = arith.constant 0 : i32
    %15 = arith.cmpi ne, %14, %c0_i32_8 : i32
    scf.if %15 {
      %c0_9 = arith.constant 0 : index
      %c0_10 = arith.constant 0 : index
      %16 = vector.load %arg7[%c0_9, %c0_10] : memref<16x128xf32, #tpu.memory_space<vmem>>, vector<16x128xf32>
      %c0_11 = arith.constant 0 : index
      %c0_12 = arith.constant 0 : index
      %17 = vector.load %arg4[%c0_11, %c0_12] : memref<1x128xf32, #tpu.memory_space<vmem>>, vector<1x128xf32>
      %18 = vector.broadcast %17 : vector<1x128xf32> to vector<16x128xf32>
      %19 = arith.addf %16, %18 : vector<16x128xf32>
      %20 = math.tanh %19 : vector<16x128xf32>
      %c0_13 = arith.constant 0 : index
      %c0_14 = arith.constant 0 : index
      %21 = vector.load %arg5[%c0_13, %c0_14] : memref<16x128xf32, #tpu.memory_space<vmem>>, vector<16x128xf32>
      tpu.vector_store %arg5[%c0_13, %c0_14], %20 {strides = array<i32>} : memref<16x128xf32, #tpu.memory_space<vmem>>, vector<16x128xf32>,
      %22 = arith.truncf %20 : vector<16x128xf32> to vector<16x128xbf16>
      %c0_15 = arith.constant 0 : index
      %c0_16 = arith.constant 0 : index
      %23 = vector.load %arg6[%c0_15, %c0_16] : memref<16x128xbf16, #tpu.memory_space<vmem>>, vector<16x128xbf16>
      tpu.vector_store %arg6[%c0_15, %c0_16], %22 {strides = array<i32>} : memref<16x128xbf16, #tpu.memory_space<vmem>>, vector<16x128xbf16>,
    } else {
    }
    return
  }
  func.func @transform_0(%arg0: i32, %arg1: i32) -> (i32, i32) {
    %c0_i32 = arith.constant 0 : i32
    return %arg0, %arg1 : i32, i32
  }
  func.func @transform_1(%arg0: i32, %arg1: i32) -> (i32, i32) {
    %c0_i32 = arith.constant 0 : i32
    %c0_i32_0 = arith.constant 0 : i32
    %c0_i32_1 = arith.constant 0 : i32
    return %c0_i32, %c0_i32_0 : i32, i32
  }
  func.func @transform_2(%arg0: i32, %arg1: i32) -> (i32, i32) {
    %c0_i32 = arith.constant 0 : i32
    %c0_i32_0 = arith.constant 0 : i32
    %c0_i32_1 = arith.constant 0 : i32
    return %c0_i32, %c0_i32_0 : i32, i32
  }
  func.func @transform_3(%arg0: i32, %arg1: i32) -> (i32, i32) {
    %c0_i32 = arith.constant 0 : i32
    %c0_i32_0 = arith.constant 0 : i32
    return %arg0, %c0_i32 : i32, i32
  }
  func.func @transform_4(%arg0: i32, %arg1: i32) -> (i32, i32) {
    %c0_i32 = arith.constant 0 : i32
    %c0_i32_0 = arith.constant 0 : i32
    return %arg0, %c0_i32 : i32, i32
  }
}

module attributes {stable_mosaic.version = 11 : i64} {
  func.func @_decoder_kernel(%arg0: i32, %arg1: i32, %arg2: memref<16x128xbf16, #tpu.memory_space<vmem>>, %arg3: memref<128x1024xbf16, #tpu.memory_space<vmem>>, %arg4: memref<1x1024xf32, #tpu.memory_space<vmem>>, %arg5: memref<16x1024xf32, #tpu.memory_space<vmem>>) attributes {dimension_semantics = [#tpu.dimension_semantics<parallel>, #tpu.dimension_semantics<parallel>], iteration_bounds = array<i64: 1, 1>, scalar_prefetch = 0 : i64, scratch_operands = 0 : i64, tpu.core_type = #tpu.core_type<tc>, window_params = [{transform_indices = @transform_0, window_bounds = array<i64: 16, 128>}, {transform_indices = @transform_1, window_bounds = array<i64: 128, 1024>}, {transform_indices = @transform_2, window_bounds = array<i64: 1, 1024>}, {transform_indices = @transform_3, window_bounds = array<i64: 16, 1024>}]} {
    %c0 = arith.constant 0 : index
    %c0_0 = arith.constant 0 : index
    %0 = vector.load %arg2[%c0, %c0_0] : memref<16x128xbf16, #tpu.memory_space<vmem>>, vector<16x128xbf16>
    %c0_1 = arith.constant 0 : index
    %c0_2 = arith.constant 0 : index
    %1 = vector.load %arg3[%c0_1, %c0_2] : memref<128x1024xbf16, #tpu.memory_space<vmem>>, vector<128x1024xbf16>
    %cst = arith.constant dense<0.000000e+00> : vector<16x1024xf32>
    %2 = tpu.matmul %0, %1, %cst {dimension_numbers = #tpu.dot_dimension_numbers<[1], [0], [0], [1], [0, 0, 1, 1], [], []>} : vector<16x128xbf16>, vector<128x1024xbf16>, vector<16x1024xf32> -> vector<16x1024xf32>
    %c0_3 = arith.constant 0 : index
    %c0_4 = arith.constant 0 : index
    %3 = vector.load %arg4[%c0_3, %c0_4] : memref<1x1024xf32, #tpu.memory_space<vmem>>, vector<1x1024xf32>
    %4 = vector.broadcast %3 : vector<1x1024xf32> to vector<16x1024xf32>
    %5 = arith.addf %2, %4 : vector<16x1024xf32>
    %c0_5 = arith.constant 0 : index
    %c0_6 = arith.constant 0 : index
    %6 = vector.load %arg5[%c0_5, %c0_6] : memref<16x1024xf32, #tpu.memory_space<vmem>>, vector<16x1024xf32>
    tpu.vector_store %arg5[%c0_5, %c0_6], %5 {strides = array<i32>} : memref<16x1024xf32, #tpu.memory_space<vmem>>, vector<16x1024xf32>,
    return
  }
  func.func @transform_0(%arg0: i32, %arg1: i32) -> (i32, i32) {
    %c0_i32 = arith.constant 0 : i32
    %c0_i32_0 = arith.constant 0 : i32
    return %arg1, %c0_i32 : i32, i32
  }
  func.func @transform_1(%arg0: i32, %arg1: i32) -> (i32, i32) {
    %c0_i32 = arith.constant 0 : i32
    %c0_i32_0 = arith.constant 0 : i32
    return %c0_i32, %arg0 : i32, i32
  }
  func.func @transform_2(%arg0: i32, %arg1: i32) -> (i32, i32) {
    %c0_i32 = arith.constant 0 : i32
    %c0_i32_0 = arith.constant 0 : i32
    return %c0_i32, %arg0 : i32, i32
  }
  func.func @transform_3(%arg0: i32, %arg1: i32) -> (i32, i32) {
    %c0_i32 = arith.constant 0 : i32
    return %arg1, %arg0 : i32, i32
  }
}

</mosaic_0001>

<llo_original>
// kernel: aeim_forward.3
$region0: #{aeim_forward.3}
  #allocation0 [shape = 'u32[]', space=smem, size = 0x4, offset = 0x4, fixed_abs, tag = 'smem constant byte address 0x4 - core index']
  #allocation1 [shape = 'u32[144,128]{1,0:T(1,128)}', space=vmem, size = 0x12000, scoped, tag = 'internal scratch']
  %s0 = inlined_call_operand.vmem [shape: bf16[16,128], index: 0, kind: input, shape index: {}]
  %s1 = inlined_call_operand.vmem [shape: bf16[128,1024], index: 1, kind: input, shape index: {}]
  %s2 = inlined_call_operand.vmem [shape: f32[1,1024], index: 2, kind: input, shape index: {}]
  %s3 = inlined_call_operand.vmem [shape: f32[16,1024], index: 3, kind: output, shape index: {}]
  %s4 = sld [smem:[#allocation0]]
  $region22: #{aeim_forward.3} parent=0
    _
  %s6 = ssub.s32 1, %s4
  %s7 = scalar_select 0, %s6, %s4
  // Predicated region
  $region2: #{aeim_forward.3} parent=0 // pred_check
    _
  $region3: #{aeim_forward.3} parent=0 // pred_check_branch
    %9 = sbr.rel (0) target = $region5
  $region4: #{aeim_forward.3} parent=0 // pred_region
    _
  $region5: #{aeim_forward.3} parent=0 // pred_fallthru
    _
  // Predicated region
  $region6: #{aeim_forward.3} parent=0 // pred_check
    _
  $region7: #{aeim_forward.3} parent=0 // pred_check_branch
    %11 = sbr.rel (0) target = $region9
  $region8: #{aeim_forward.3} parent=0 // pred_region
    _
  $region9: #{aeim_forward.3} parent=0 // pred_fallthru
    _
  // Predicated region
  $region10: #{aeim_forward.3} parent=0 // pred_check
    _
  $region11: #{aeim_forward.3} parent=0 // pred_check_branch
    %13 = sbr.rel (0) target = $region13
  $region12: #{aeim_forward.3} parent=0 // pred_region
    _
  $region13: #{aeim_forward.3} parent=0 // pred_fallthru
    _
  %v15 = vld [vmem:[%s0] sm:$0xf]
  %v16 = vld [vmem:[%s0 + $0x4] sm:$0xf]
  %v17 = vld [vmem:[%s1] sm:$0xff]
  %v18 = vld [vmem:[%s1 + $0x8] sm:$0xff]
  %v19 = vld [vmem:[%s1 + $0x10] sm:$0xff]
  %v20 = vld [vmem:[%s1 + $0x18] sm:$0xff]
  %v21 = vld [vmem:[%s1 + $0x20] sm:$0xff]
  %v22 = vld [vmem:[%s1 + $0x28] sm:$0xff]
  %v23 = vld [vmem:[%s1 + $0x30] sm:$0xff]
  %v24 = vld [vmem:[%s1 + $0x38] sm:$0xff]
  %v25 = vld [vmem:[%s1 + $0x40] sm:$0xff]
  %v26 = vld [vmem:[%s1 + $0x48] sm:$0xff]
  %v27 = vld [vmem:[%s1 + $0x50] sm:$0xff]
  %v28 = vld [vmem:[%s1 + $0x58] sm:$0xff]
  %v29 = vld [vmem:[%s1 + $0x60] sm:$0xff]
  %v30 = vld [vmem:[%s1 + $0x68] sm:$0xff]
  %v31 = vld [vmem:[%s1 + $0x70] sm:$0xff]
  %v32 = vld [vmem:[%s1 + $0x78] sm:$0xff]
  %v33 = vld [vmem:[%s1 + $0x80] sm:$0xff]
  %v34 = vld [vmem:[%s1 + $0x88] sm:$0xff]
  %v35 = vld [vmem:[%s1 + $0x90] sm:$0xff]
  %v36 = vld [vmem:[%s1 + $0x98] sm:$0xff]
  %v37 = vld [vmem:[%s1 + $0xa0] sm:$0xff]
  %v38 = vld [vmem:[%s1 + $0xa8] sm:$0xff]
  %v39 = vld [vmem:[%s1 + $0xb0] sm:$0xff]
  %v40 = vld [vmem:[%s1 + $0xb8] sm:$0xff]
  %v41 = vld [vmem:[%s1 + $0xc0] sm:$0xff]
  %v42 = vld [vmem:[%s1 + $0xc8] sm:$0xff]
  %v43 = vld [vmem:[%s1 + $0xd0] sm:$0xff]
  %v44 = vld [vmem:[%s1 + $0xd8] sm:$0xff]
  %v45 = vld [vmem:[%s1 + $0xe0] sm:$0xff]
  %v46 = vld [vmem:[%s1 + $0xe8] sm:$0xff]
  %v47 = vld [vmem:[%s1 + $0xf0] sm:$0xff]
  %v48 = vld [vmem:[%s1 + $0xf8] sm:$0xff]
  %v49 = vld [vmem:[%s1 + $0x100] sm:$0xff]
  %v50 = vld [vmem:[%s1 + $0x108] sm:$0xff]
  %v51 = vld [vmem:[%s1 + $0x110] sm:$0xff]
  %v52 = vld [vmem:[%s1 + $0x118] sm:$0xff]
  %v53 = vld [vmem:[%s1 + $0x120] sm:$0xff]
  %v54 = vld [vmem:[%s1 + $0x128] sm:$0xff]
  %v55 = vld [vmem:[%s1 + $0x130] sm:$0xff]
  %v56 = vld [vmem:[%s1 + $0x138] sm:$0xff]
  %v57 = vld [vmem:[%s1 + $0x140] sm:$0xff]
  %v58 = vld [vmem:[%s1 + $0x148] sm:$0xff]
  %v59 = vld [vmem:[%s1 + $0x150] sm:$0xff]
  %v60 = vld [vmem:[%s1 + $0x158] sm:$0xff]
  %v61 = vld [vmem:[%s1 + $0x160] sm:$0xff]
  %v62 = vld [vmem:[%s1 + $0x168] sm:$0xff]
  %v63 = vld [vmem:[%s1 + $0x170] sm:$0xff]
  %v64 = vld [vmem:[%s1 + $0x178] sm:$0xff]
  %v65 = vld [vmem:[%s1 + $0x180] sm:$0xff]
  %v66 = vld [vmem:[%s1 + $0x188] sm:$0xff]
  %v67 = vld [vmem:[%s1 + $0x190] sm:$0xff]
  %v68 = vld [vmem:[%s1 + $0x198] sm:$0xff]
  %v69 = vld [vmem:[%s1 + $0x1a0] sm:$0xff]
  %v70 = vld [vmem:[%s1 + $0x1a8] sm:$0xff]
  %v71 = vld [vmem:[%s1 + $0x1b0] sm:$0xff]
  %v72 = vld [vmem:[%s1 + $0x1b8] sm:$0xff]
  %v73 = vld [vmem:[%s1 + $0x1c0] sm:$0xff]
  %v74 = vld [vmem:[%s1 + $0x1c8] sm:$0xff]
  %v75 = vld [vmem:[%s1 + $0x1d0] sm:$0xff]
  %v76 = vld [vmem:[%s1 + $0x1d8] sm:$0xff]
  %v77 = vld [vmem:[%s1 + $0x1e0] sm:$0xff]
  %v78 = vld [vmem:[%s1 + $0x1e8] sm:$0xff]
  %v79 = vld [vmem:[%s1 + $0x1f0] sm:$0xff]
  %v80 = vld [vmem:[%s1 + $0x1f8] sm:$0xff]
  %v81 = vld [vmem:[%s2] sm:$0xff]
  %v83 = vlaneseq
  %v84 = vshrl.u32 %v83, 7
  %v85 = vsub.s32 0, %v84
  %v86 = vrot.slane %v81, %v85
  %v87 = vlaneseq
  %v88 = vshrl.u32 %v87, 7
  %v89 = vsub.s32 1, %v88
  %v90 = vrot.slane %v81, %v89
  %v91 = vlaneseq
  %v92 = vshrl.u32 %v91, 7
  %v93 = vsub.s32 2, %v92
  %v94 = vrot.slane %v81, %v93
  %v95 = vlaneseq
  %v96 = vshrl.u32 %v95, 7
  %v97 = vsub.s32 3, %v96
  %v98 = vrot.slane %v81, %v97
  %v99 = vlaneseq
  %v100 = vshrl.u32 %v99, 7
  %v101 = vsub.s32 4, %v100
  %v102 = vrot.slane %v81, %v101
  %v103 = vlaneseq
  %v104 = vshrl.u32 %v103, 7
  %v105 = vsub.s32 5, %v104
  %v106 = vrot.slane %v81, %v105
  %v107 = vlaneseq
  %v108 = vshrl.u32 %v107, 7
  %v109 = vsub.s32 6, %v108
  %v110 = vrot.slane %v81, %v109
  %v111 = vlaneseq
  %v112 = vshrl.u32 %v111, 7
  %v113 = vsub.s32 7, %v112
  %v114 = vrot.slane %v81, %v113
  %v125 = vunpack.c.l.b16 %v15
  %v126 = vunpack.c.l.b16 %v16
  %v127 = vpack.c.b16 %v126, %v125
  %v193 = vunpack.c.l.b16 %v17
  %v194 = vunpack.c.h.b16 %v17
  %v195 = vunpack.c.l.b16 %v18
  %v196 = vunpack.c.h.b16 %v18
  %v197 = vunpack.c.l.b16 %v19
  %v198 = vunpack.c.h.b16 %v19
  %v199 = vunpack.c.l.b16 %v20
  %v200 = vunpack.c.h.b16 %v20
  %v201 = vunpack.c.l.b16 %v21
  %v202 = vunpack.c.h.b16 %v21
  %v203 = vunpack.c.l.b16 %v22
  %v204 = vunpack.c.h.b16 %v22
  %v205 = vunpack.c.l.b16 %v23
  %v206 = vunpack.c.h.b16 %v23
  %v207 = vunpack.c.l.b16 %v24
  %v208 = vunpack.c.h.b16 %v24
  %v209 = vunpack.c.l.b16 %v25
  %v210 = vunpack.c.h.b16 %v25
  %v211 = vunpack.c.l.b16 %v26
  %v212 = vunpack.c.h.b16 %v26
  %v213 = vunpack.c.l.b16 %v27
  %v214 = vunpack.c.h.b16 %v27
  %v215 = vunpack.c.l.b16 %v28
  %v216 = vunpack.c.h.b16 %v28
  %v217 = vunpack.c.l.b16 %v29
  %v218 = vunpack.c.h.b16 %v29
  %v219 = vunpack.c.l.b16 %v30
  %v220 = vunpack.c.h.b16 %v30
  %v221 = vunpack.c.l.b16 %v31
  %v222 = vunpack.c.h.b16 %v31
  %v223 = vunpack.c.l.b16 %v32
  %v224 = vunpack.c.h.b16 %v32
  %v225 = vunpack.c.l.b16 %v33
  %v226 = vunpack.c.h.b16 %v33
  %v227 = vunpack.c.l.b16 %v34
  %v228 = vunpack.c.h.b16 %v34
  %v229 = vunpack.c.l.b16 %v35
  %v230 = vunpack.c.h.b16 %v35
  %v231 = vunpack.c.l.b16 %v36
  %v232 = vunpack.c.h.b16 %v36
  %v233 = vunpack.c.l.b16 %v37
  %v234 = vunpack.c.h.b16 %v37
  %v235 = vunpack.c.l.b16 %v38
  %v236 = vunpack.c.h.b16 %v38
  %v237 = vunpack.c.l.b16 %v39
  %v238 = vunpack.c.h.b16 %v39
  %v239 = vunpack.c.l.b16 %v40
  %v240 = vunpack.c.h.b16 %v40
  %v241 = vunpack.c.l.b16 %v41
  %v242 = vunpack.c.h.b16 %v41
  %v243 = vunpack.c.l.b16 %v42
  %v244 = vunpack.c.h.b16 %v42
  %v245 = vunpack.c.l.b16 %v43
  %v246 = vunpack.c.h.b16 %v43
  %v247 = vunpack.c.l.b16 %v44
  %v248 = vunpack.c.h.b16 %v44
  %v249 = vunpack.c.l.b16 %v45
  %v250 = vunpack.c.h.b16 %v45
  %v251 = vunpack.c.l.b16 %v46
  %v252 = vunpack.c.h.b16 %v46
  %v253 = vunpack.c.l.b16 %v47
  %v254 = vunpack.c.h.b16 %v47
  %v255 = vunpack.c.l.b16 %v48
  %v256 = vunpack.c.h.b16 %v48
  %v257 = vunpack.c.l.b16 %v49
  %v258 = vunpack.c.h.b16 %v49
  %v259 = vunpack.c.l.b16 %v50
  %v260 = vunpack.c.h.b16 %v50
  %v261 = vunpack.c.l.b16 %v51
  %v262 = vunpack.c.h.b16 %v51
  %v263 = vunpack.c.l.b16 %v52
  %v264 = vunpack.c.h.b16 %v52
  %v265 = vunpack.c.l.b16 %v53
  %v266 = vunpack.c.h.b16 %v53
  %v267 = vunpack.c.l.b16 %v54
  %v268 = vunpack.c.h.b16 %v54
  %v269 = vunpack.c.l.b16 %v55
  %v270 = vunpack.c.h.b16 %v55
  %v271 = vunpack.c.l.b16 %v56
  %v272 = vunpack.c.h.b16 %v56
  %v273 = vunpack.c.l.b16 %v57
  %v274 = vunpack.c.h.b16 %v57
  %v275 = vunpack.c.l.b16 %v58
  %v276 = vunpack.c.h.b16 %v58
  %v277 = vunpack.c.l.b16 %v59
  %v278 = vunpack.c.h.b16 %v59
  %v279 = vunpack.c.l.b16 %v60
  %v280 = vunpack.c.h.b16 %v60
  %v281 = vunpack.c.l.b16 %v61
  %v282 = vunpack.c.h.b16 %v61
  %v283 = vunpack.c.l.b16 %v62
  %v284 = vunpack.c.h.b16 %v62
  %v285 = vunpack.c.l.b16 %v63
  %v286 = vunpack.c.h.b16 %v63
  %v287 = vunpack.c.l.b16 %v64
  %v288 = vunpack.c.h.b16 %v64
  %v289 = vunpack.c.l.b16 %v65
  %v290 = vunpack.c.h.b16 %v65
  %v291 = vunpack.c.l.b16 %v66
  %v292 = vunpack.c.h.b16 %v66
  %v293 = vunpack.c.l.b16 %v67
  %v294 = vunpack.c.h.b16 %v67
  %v295 = vunpack.c.l.b16 %v68
  %v296 = vunpack.c.h.b16 %v68
  %v297 = vunpack.c.l.b16 %v69
  %v298 = vunpack.c.h.b16 %v69
  %v299 = vunpack.c.l.b16 %v70
  %v300 = vunpack.c.h.b16 %v70
  %v301 = vunpack.c.l.b16 %v71
  %v302 = vunpack.c.h.b16 %v71
  %v303 = vunpack.c.l.b16 %v72
  %v304 = vunpack.c.h.b16 %v72
  %v305 = vunpack.c.l.b16 %v73
  %v306 = vunpack.c.h.b16 %v73
  %v307 = vunpack.c.l.b16 %v74
  %v308 = vunpack.c.h.b16 %v74
  %v309 = vunpack.c.l.b16 %v75
  %v310 = vunpack.c.h.b16 %v75
  %v311 = vunpack.c.l.b16 %v76
  %v312 = vunpack.c.h.b16 %v76
  %v313 = vunpack.c.l.b16 %v77
  %v314 = vunpack.c.h.b16 %v77
  %v315 = vunpack.c.l.b16 %v78
  %v316 = vunpack.c.h.b16 %v78
  %v317 = vunpack.c.l.b16 %v79
  %v318 = vunpack.c.h.b16 %v79
  %v319 = vunpack.c.l.b16 %v80
  %v320 = vunpack.c.h.b16 %v80
  %v321 = vpack.c.b16 %v201, %v193
  %v322 = vpack.c.b16 %v202, %v194
  %v323 = vpack.c.b16 %v203, %v195
  %v324 = vpack.c.b16 %v204, %v196
  %v325 = vpack.c.b16 %v205, %v197
  %v326 = vpack.c.b16 %v206, %v198
  %v327 = vpack.c.b16 %v207, %v199
  %v328 = vpack.c.b16 %v208, %v200
  %v329 = vpack.c.b16 %v217, %v209
  %v330 = vpack.c.b16 %v218, %v210
  %v331 = vpack.c.b16 %v219, %v211
  %v332 = vpack.c.b16 %v220, %v212
  %v333 = vpack.c.b16 %v221, %v213
  %v334 = vpack.c.b16 %v222, %v214
  %v335 = vpack.c.b16 %v223, %v215
  %v336 = vpack.c.b16 %v224, %v216
  %v337 = vpack.c.b16 %v233, %v225
  %v338 = vpack.c.b16 %v234, %v226
  %v339 = vpack.c.b16 %v235, %v227
  %v340 = vpack.c.b16 %v236, %v228
  %v341 = vpack.c.b16 %v237, %v229
  %v342 = vpack.c.b16 %v238, %v230
  %v343 = vpack.c.b16 %v239, %v231
  %v344 = vpack.c.b16 %v240, %v232
  %v345 = vpack.c.b16 %v249, %v241
  %v346 = vpack.c.b16 %v250, %v242
  %v347 = vpack.c.b16 %v251, %v243
  %v348 = vpack.c.b16 %v252, %v244
  %v349 = vpack.c.b16 %v253, %v245
  %v350 = vpack.c.b16 %v254, %v246
  %v351 = vpack.c.b16 %v255, %v247
  %v352 = vpack.c.b16 %v256, %v248
  %v353 = vpack.c.b16 %v265, %v257
  %v354 = vpack.c.b16 %v266, %v258
  %v355 = vpack.c.b16 %v267, %v259
  %v356 = vpack.c.b16 %v268, %v260
  %v357 = vpack.c.b16 %v269, %v261
  %v358 = vpack.c.b16 %v270, %v262
  %v359 = vpack.c.b16 %v271, %v263
  %v360 = vpack.c.b16 %v272, %v264
  %v361 = vpack.c.b16 %v281, %v273
  %v362 = vpack.c.b16 %v282, %v274
  %v363 = vpack.c.b16 %v283, %v275
  %v364 = vpack.c.b16 %v284, %v276
  %v365 = vpack.c.b16 %v285, %v277
  %v366 = vpack.c.b16 %v286, %v278
  %v367 = vpack.c.b16 %v287, %v279
  %v368 = vpack.c.b16 %v288, %v280
  %v369 = vpack.c.b16 %v297, %v289
  %v370 = vpack.c.b16 %v298, %v290
  %v371 = vpack.c.b16 %v299, %v291
  %v372 = vpack.c.b16 %v300, %v292
  %v373 = vpack.c.b16 %v301, %v293
  %v374 = vpack.c.b16 %v302, %v294
  %v375 = vpack.c.b16 %v303, %v295
  %v376 = vpack.c.b16 %v304, %v296
  %v377 = vpack.c.b16 %v313, %v305
  %v378 = vpack.c.b16 %v314, %v306
  %v379 = vpack.c.b16 %v315, %v307
  %v380 = vpack.c.b16 %v316, %v308
  %v381 = vpack.c.b16 %v317, %v309
  %v382 = vpack.c.b16 %v318, %v310
  %v383 = vpack.c.b16 %v319, %v311
  %v384 = vpack.c.b16 %v320, %v312
  %449 = vmatprep.subr.bf16.mxu0 %v378
  %450 = vmatpush1.bf16.msra.mxu0 %v377
  %451 = vmatprep.subr.bf16.mxu0 %v370
  %452 = vmatpush1.bf16.msra.mxu0 %v369
  %453 = vmatprep.subr.bf16.mxu0 %v362
  %454 = vmatpush1.bf16.msra.mxu0 %v361
  %455 = vmatprep.subr.bf16.mxu0 %v354
  %456 = vmatpush1.bf16.msra.mxu0 %v353
  %457 = vmatprep.subr.bf16.mxu0 %v346
  %458 = vmatpush1.bf16.msra.mxu0 %v345
  %459 = vmatprep.subr.bf16.mxu0 %v338
  %460 = vmatpush1.bf16.msra.mxu0 %v337
  %461 = vmatprep.subr.bf16.mxu0 %v330
  %462 = vmatpush1.bf16.msra.mxu0 %v329
  %463 = vmatprep.subr.bf16.mxu0 %v322
  %464 = vmatpush1.bf16.msra.mxu0 %v321
  %465 = vmatprep.subr.bf16.mxu0 0
  %466 = vmatpush2.bf16.msra.mxu0 0
  %467 = vmatprep.subr.bf16.mxu0 0
  %468 = vmatpush2.bf16.msra.mxu0 0
  %469 = vmatprep.subr.bf16.mxu0 0
  %470 = vmatpush2.bf16.msra.mxu0 0
  %471 = vmatprep.subr.bf16.mxu0 0
  %472 = vmatpush2.bf16.msra.mxu0 0
  %473 = vmatprep.subr.bf16.mxu0 0
  %474 = vmatpush2.bf16.msra.mxu0 0
  %475 = vmatprep.subr.bf16.mxu0 0
  %476 = vmatpush2.bf16.msra.mxu0 0
  %477 = vmatprep.subr.bf16.mxu0 0
  %478 = vmatpush2.bf16.msra.mxu0 0
  %479 = vmatprep.subr.bf16.mxu0 0
  %480 = vmatpush2.bf16.msra.mxu0 0
  %481 = vmatprep.mubr.bf16.mxu0 0
  %482 = vmatmul.mubr.bf16.gmra.mxu0 %v127
  %v483 = vpop.f32.mrf.mxu0
  %v484 = vadd.f32 %v86, %v483
  %v485 = vpop.f32.mrf.mxu0
  %v486 = vadd.f32 %v90, %v485
  %v487 = vpop.f32.mrf.mxu0
  %v488 = vadd.f32 %v86, %v487
  %v489 = vpop.f32.mrf.mxu0
  %v490 = vadd.f32 %v90, %v489
  %491 = vdwg.mxu0
  %492 = vmatprep.subr.bf16.mxu0 %v380
  %493 = vmatpush1.bf16.msra.mxu0 %v379
  %494 = vmatprep.subr.bf16.mxu0 %v372
  %495 = vmatpush1.bf16.msra.mxu0 %v371
  %496 = vmatprep.subr.bf16.mxu0 %v364
  %497 = vmatpush1.bf16.msra.mxu0 %v363
  %498 = vmatprep.subr.bf16.mxu0 %v356
  %499 = vmatpush1.bf16.msra.mxu0 %v355
  %500 = vmatprep.subr.bf16.mxu0 %v348
  %501 = vmatpush1.bf16.msra.mxu0 %v347
  %502 = vmatprep.subr.bf16.mxu0 %v340
  %503 = vmatpush1.bf16.msra.mxu0 %v339
  %504 = vmatprep.subr.bf16.mxu0 %v332
  %505 = vmatpush1.bf16.msra.mxu0 %v331
  %506 = vmatprep.subr.bf16.mxu0 %v324
  %507 = vmatpush1.bf16.msra.mxu0 %v323
  %508 = vmatprep.subr.bf16.mxu0 0
  %509 = vmatpush2.bf16.msra.mxu0 0
  %510 = vmatprep.subr.bf16.mxu0 0
  %511 = vmatpush2.bf16.msra.mxu0 0
  %512 = vmatprep.subr.bf16.mxu0 0
  %513 = vmatpush2.bf16.msra.mxu0 0
  %514 = vmatprep.subr.bf16.mxu0 0
  %515 = vmatpush2.bf16.msra.mxu0 0
  %516 = vmatprep.subr.bf16.mxu0 0
  %517 = vmatpush2.bf16.msra.mxu0 0
  %518 = vmatprep.subr.bf16.mxu0 0
  %519 = vmatpush2.bf16.msra.mxu0 0
  %520 = vmatprep.subr.bf16.mxu0 0
  %521 = vmatpush2.bf16.msra.mxu0 0
  %522 = vmatprep.subr.bf16.mxu0 0
  %523 = vmatpush2.bf16.msra.mxu0 0
  %524 = vmatprep.mubr.bf16.mxu0 0
  %525 = vmatmul.mubr.bf16.gmra.mxu0 %v127
  %v526 = vpop.f32.mrf.mxu0
  %v527 = vadd.f32 %v94, %v526
  %v528 = vpop.f32.mrf.mxu0
  %v529 = vadd.f32 %v98, %v528
  %v530 = vpop.f32.mrf.mxu0
  %v531 = vadd.f32 %v94, %v530
  %v532 = vpop.f32.mrf.mxu0
  %v533 = vadd.f32 %v98, %v532
  %534 = vdwg.mxu0
  %535 = vmatprep.subr.bf16.mxu0 %v382
  %536 = vmatpush1.bf16.msra.mxu0 %v381
  %537 = vmatprep.subr.bf16.mxu0 %v374
  %538 = vmatpush1.bf16.msra.mxu0 %v373
  %539 = vmatprep.subr.bf16.mxu0 %v366
  %540 = vmatpush1.bf16.msra.mxu0 %v365
  %541 = vmatprep.subr.bf16.mxu0 %v358
  %542 = vmatpush1.bf16.msra.mxu0 %v357
  %543 = vmatprep.subr.bf16.mxu0 %v350
  %544 = vmatpush1.bf16.msra.mxu0 %v349
  %545 = vmatprep.subr.bf16.mxu0 %v342
  %546 = vmatpush1.bf16.msra.mxu0 %v341
  %547 = vmatprep.subr.bf16.mxu0 %v334
  %548 = vmatpush1.bf16.msra.mxu0 %v333
  %549 = vmatprep.subr.bf16.mxu0 %v326
  %550 = vmatpush1.bf16.msra.mxu0 %v325
  %551 = vmatprep.subr.bf16.mxu0 0
  %552 = vmatpush2.bf16.msra.mxu0 0
  %553 = vmatprep.subr.bf16.mxu0 0
  %554 = vmatpush2.bf16.msra.mxu0 0
  %555 = vmatprep.subr.bf16.mxu0 0
  %556 = vmatpush2.bf16.msra.mxu0 0
  %557 = vmatprep.subr.bf16.mxu0 0
  %558 = vmatpush2.bf16.msra.mxu0 0
  %559 = vmatprep.subr.bf16.mxu0 0
  %560 = vmatpush2.bf16.msra.mxu0 0
  %561 = vmatprep.subr.bf16.mxu0 0
  %562 = vmatpush2.bf16.msra.mxu0 0
  %563 = vmatprep.subr.bf16.mxu0 0
  %564 = vmatpush2.bf16.msra.mxu0 0
  %565 = vmatprep.subr.bf16.mxu0 0
  %566 = vmatpush2.bf16.msra.mxu0 0
  %567 = vmatprep.mubr.bf16.mxu0 0
  %568 = vmatmul.mubr.bf16.gmra.mxu0 %v127
  %v569 = vpop.f32.mrf.mxu0
  %v570 = vadd.f32 %v102, %v569
  %v571 = vpop.f32.mrf.mxu0
  %v572 = vadd.f32 %v106, %v571
  %v573 = vpop.f32.mrf.mxu0
  %v574 = vadd.f32 %v102, %v573
  %v575 = vpop.f32.mrf.mxu0
  %v576 = vadd.f32 %v106, %v575
  %577 = vdwg.mxu0
  %578 = vmatprep.subr.bf16.mxu0 %v384
  %579 = vmatpush1.bf16.msra.mxu0 %v383
  %580 = vmatprep.subr.bf16.mxu0 %v376
  %581 = vmatpush1.bf16.msra.mxu0 %v375
  %582 = vmatprep.subr.bf16.mxu0 %v368
  %583 = vmatpush1.bf16.msra.mxu0 %v367
  %584 = vmatprep.subr.bf16.mxu0 %v360
  %585 = vmatpush1.bf16.msra.mxu0 %v359
  %586 = vmatprep.subr.bf16.mxu0 %v352
  %587 = vmatpush1.bf16.msra.mxu0 %v351
  %588 = vmatprep.subr.bf16.mxu0 %v344
  %589 = vmatpush1.bf16.msra.mxu0 %v343
  %590 = vmatprep.subr.bf16.mxu0 %v336
  %591 = vmatpush1.bf16.msra.mxu0 %v335
  %592 = vmatprep.subr.bf16.mxu0 %v328
  %593 = vmatpush1.bf16.msra.mxu0 %v327
  %594 = vmatprep.subr.bf16.mxu0 0
  %595 = vmatpush2.bf16.msra.mxu0 0
  %596 = vmatprep.subr.bf16.mxu0 0
  %597 = vmatpush2.bf16.msra.mxu0 0
  %598 = vmatprep.subr.bf16.mxu0 0
  %599 = vmatpush2.bf16.msra.mxu0 0
  %600 = vmatprep.subr.bf16.mxu0 0
  %601 = vmatpush2.bf16.msra.mxu0 0
  %602 = vmatprep.subr.bf16.mxu0 0
  %603 = vmatpush2.bf16.msra.mxu0 0
  %604 = vmatprep.subr.bf16.mxu0 0
  %605 = vmatpush2.bf16.msra.mxu0 0
  %606 = vmatprep.subr.bf16.mxu0 0
  %607 = vmatpush2.bf16.msra.mxu0 0
  %608 = vmatprep.subr.bf16.mxu0 0
  %609 = vmatpush2.bf16.msra.mxu0 0
  %610 = vmatprep.mubr.bf16.mxu0 0
  %611 = vmatmul.mubr.bf16.gmra.mxu0 %v127
  %v612 = vpop.f32.mrf.mxu0
  %v613 = vadd.f32 %v110, %v612
  %v614 = vpop.f32.mrf.mxu0
  %v615 = vadd.f32 %v114, %v614
  %v616 = vpop.f32.mrf.mxu0
  %v617 = vadd.f32 %v110, %v616
  %v618 = vpop.f32.mrf.mxu0
  %v619 = vadd.f32 %v114, %v618
  %620 = vdwg.mxu0
  %621 = vst [vmem:[%s3] sm:$0xff] %v484
  %622 = vst [vmem:[%s3 + $0x8] sm:$0xff] %v486
  %623 = vst [vmem:[%s3 + $0x10] sm:$0xff] %v527
  %624 = vst [vmem:[%s3 + $0x18] sm:$0xff] %v529
  %625 = vst [vmem:[%s3 + $0x20] sm:$0xff] %v570
  %626 = vst [vmem:[%s3 + $0x28] sm:$0xff] %v572
  %627 = vst [vmem:[%s3 + $0x30] sm:$0xff] %v613
  %628 = vst [vmem:[%s3 + $0x38] sm:$0xff] %v615
  %629 = vst [vmem:[%s3 + $0x40] sm:$0xff] %v488
  %630 = vst [vmem:[%s3 + $0x48] sm:$0xff] %v490
  %631 = vst [vmem:[%s3 + $0x50] sm:$0xff] %v531
  %632 = vst [vmem:[%s3 + $0x58] sm:$0xff] %v533
  %633 = vst [vmem:[%s3 + $0x60] sm:$0xff] %v574
  %634 = vst [vmem:[%s3 + $0x68] sm:$0xff] %v576
  %635 = vst [vmem:[%s3 + $0x70] sm:$0xff] %v617
  %636 = vst [vmem:[%s3 + $0x78] sm:$0xff] %v619
  // Predicated region
  $region14: #{aeim_forward.3} parent=0 // pred_check
    _
  $region15: #{aeim_forward.3} parent=0 // pred_check_branch
    %638 = sbr.rel (0) target = $region17
  $region16: #{aeim_forward.3} parent=0 // pred_region
    _
  $region17: #{aeim_forward.3} parent=0 // pred_fallthru
    _
  // Predicated region
  $region18: #{aeim_forward.3} parent=0 // pred_check
    _
  $region19: #{aeim_forward.3} parent=0 // pred_check_branch
    %640 = sbr.rel (0) target = $region21
  $region20: #{aeim_forward.3} parent=0 // pred_region
    _
  $region21: #{aeim_forward.3} parent=0 // pred_fallthru
    _

// kernel: aeim_forward.2
$region0: #{aeim_forward.2}
  #allocation0 [shape = 'u32[]', space=smem, size = 0x4, offset = 0x4, fixed_abs, tag = 'smem constant byte address 0x4 - core index']
  #allocation1 [shape = 'u32[144,128]{1,0:T(1,128)}', space=vmem, size = 0x12000, scoped, tag = 'internal scratch']
  #allocation2 [shape = 'f32[16,128]{1,0:T(8,128)}', space=vmem, size = 0x2000, scoped, tag = 'scratch operand']
  %s0 = inlined_call_operand.vmem [shape: f32[16,1024], index: 0, kind: input, shape index: {}]
  %s1 = inlined_call_operand.vmem [shape: bf16[1024,128], index: 1, kind: input, shape index: {}]
  %s2 = inlined_call_operand.vmem [shape: f32[1,128], index: 2, kind: input, shape index: {}]
  %s3 = inlined_call_operand.vmem [shape: f32[16,128], index: 3, kind: output, shape index: {0}]
  %s4 = inlined_call_operand.vmem [shape: bf16[16,128], index: 4, kind: output, shape index: {1}]
  %5 = xla_tuple %s3, %s4
  %s6 = sld [smem:[#allocation0]]
  $region38: #{aeim_forward.2} parent=0
    _
  %s8 = ssub.s32 1, %s6
  %s9 = scalar_select 0, %s8, %s6
  // Predicated region
  $region2: #{aeim_forward.2} parent=0 // pred_check
    _
  $region3: #{aeim_forward.2} parent=0 // pred_check_branch
    %11 = sbr.rel (0) target = $region5
  $region4: #{aeim_forward.2} parent=0 // pred_region
    _
  $region5: #{aeim_forward.2} parent=0 // pred_fallthru
    _
  // Predicated region
  $region6: #{aeim_forward.2} parent=0 // pred_check
    _
  $region7: #{aeim_forward.2} parent=0 // pred_check_branch
    %13 = sbr.rel (0) target = $region9
  $region8: #{aeim_forward.2} parent=0 // pred_region
    _
  $region9: #{aeim_forward.2} parent=0 // pred_fallthru
    _
  // Predicated region
  $region10: #{aeim_forward.2} parent=0 // pred_check
    _
  $region11: #{aeim_forward.2} parent=0 // pred_check_branch
    %15 = sbr.rel (0) target = $region13
  $region12: #{aeim_forward.2} parent=0 // pred_region
    _
  $region13: #{aeim_forward.2} parent=0 // pred_fallthru
    _
  %p17 = scmp.eq.s32.totalorder 0, 0
  // Predicated region
  $region14: #{aeim_forward.2} parent=0 // pred_check
    %p18 = pneg %p17
  $region15: #{aeim_forward.2} parent=0 // pred_check_branch
    %20 = sbr.rel (%p18) target = $region17
  $region16: #{aeim_forward.2} parent=0 // pred_region
    %21 = vst [vmem:[#allocation2] sm:$0xff] 0.0
    %22 = vst [vmem:[#allocation2 + $0x8] sm:$0xff] 0.0
  $region17: #{aeim_forward.2} parent=0 // pred_fallthru
    _
  %s23 = smul.u32 0, 1024
  %s24 = sshra.s32 %s23, 3
  %s25 = sand.u32 %s23, 7
  %s26 = smul.addr %s24, 4
  %s27 = scalar_lea.vmem %s1, %s26
  %v28 = vld [vmem:[%s27] sm:$0xf]
  %v29 = vld [vmem:[%s27 + $0x4] sm:$0xf]
  %v30 = vld [vmem:[%s27 + $0x8] sm:$0xf]
  %v31 = vld [vmem:[%s27 + $0xc] sm:$0xf]
  %v32 = vld [vmem:[%s27 + $0x10] sm:$0xf]
  %v33 = vld [vmem:[%s27 + $0x14] sm:$0xf]
  %v34 = vld [vmem:[%s27 + $0x18] sm:$0xf]
  %v35 = vld [vmem:[%s27 + $0x1c] sm:$0xf]
  %v36 = vld [vmem:[%s27 + $0x20] sm:$0xf]
  %v37 = vld [vmem:[%s27 + $0x24] sm:$0xf]
  %v38 = vld [vmem:[%s27 + $0x28] sm:$0xf]
  %v39 = vld [vmem:[%s27 + $0x2c] sm:$0xf]
  %v40 = vld [vmem:[%s27 + $0x30] sm:$0xf]
  %v41 = vld [vmem:[%s27 + $0x34] sm:$0xf]
  %v42 = vld [vmem:[%s27 + $0x38] sm:$0xf]
  %v43 = vld [vmem:[%s27 + $0x3c] sm:$0xf]
  %v44 = vld [vmem:[%s27 + $0x40] sm:$0xf]
  %v45 = vld [vmem:[%s27 + $0x44] sm:$0xf]
  %v46 = vld [vmem:[%s27 + $0x48] sm:$0xf]
  %v47 = vld [vmem:[%s27 + $0x4c] sm:$0xf]
  %v48 = vld [vmem:[%s27 + $0x50] sm:$0xf]
  %v49 = vld [vmem:[%s27 + $0x54] sm:$0xf]
  %v50 = vld [vmem:[%s27 + $0x58] sm:$0xf]
  %v51 = vld [vmem:[%s27 + $0x5c] sm:$0xf]
  %v52 = vld [vmem:[%s27 + $0x60] sm:$0xf]
  %v53 = vld [vmem:[%s27 + $0x64] sm:$0xf]
  %v54 = vld [vmem:[%s27 + $0x68] sm:$0xf]
  %v55 = vld [vmem:[%s27 + $0x6c] sm:$0xf]
  %v56 = vld [vmem:[%s27 + $0x70] sm:$0xf]
  %v57 = vld [vmem:[%s27 + $0x74] sm:$0xf]
  %v58 = vld [vmem:[%s27 + $0x78] sm:$0xf]
  %v59 = vld [vmem:[%s27 + $0x7c] sm:$0xf]
  %v60 = vld [vmem:[%s27 + $0x80] sm:$0xf]
  %v61 = vld [vmem:[%s27 + $0x84] sm:$0xf]
  %v62 = vld [vmem:[%s27 + $0x88] sm:$0xf]
  %v63 = vld [vmem:[%s27 + $0x8c] sm:$0xf]
  %v64 = vld [vmem:[%s27 + $0x90] sm:$0xf]
  %v65 = vld [vmem:[%s27 + $0x94] sm:$0xf]
  %v66 = vld [vmem:[%s27 + $0x98] sm:$0xf]
  %v67 = vld [vmem:[%s27 + $0x9c] sm:$0xf]
  %v68 = vld [vmem:[%s27 + $0xa0] sm:$0xf]
  %v69 = vld [vmem:[%s27 + $0xa4] sm:$0xf]
  %v70 = vld [vmem:[%s27 + $0xa8] sm:$0xf]
  %v71 = vld [vmem:[%s27 + $0xac] sm:$0xf]
  %v72 = vld [vmem:[%s27 + $0xb0] sm:$0xf]
  %v73 = vld [vmem:[%s27 + $0xb4] sm:$0xf]
  %v74 = vld [vmem:[%s27 + $0xb8] sm:$0xf]
  %v75 = vld [vmem:[%s27 + $0xbc] sm:$0xf]
  %v76 = vld [vmem:[%s27 + $0xc0] sm:$0xf]
  %v77 = vld [vmem:[%s27 + $0xc4] sm:$0xf]
  %v78 = vld [vmem:[%s27 + $0xc8] sm:$0xf]
  %v79 = vld [vmem:[%s27 + $0xcc] sm:$0xf]
  %v80 = vld [vmem:[%s27 + $0xd0] sm:$0xf]
  %v81 = vld [vmem:[%s27 + $0xd4] sm:$0xf]
  %v82 = vld [vmem:[%s27 + $0xd8] sm:$0xf]
  %v83 = vld [vmem:[%s27 + $0xdc] sm:$0xf]
  %v84 = vld [vmem:[%s27 + $0xe0] sm:$0xf]
  %v85 = vld [vmem:[%s27 + $0xe4] sm:$0xf]
  %v86 = vld [vmem:[%s27 + $0xe8] sm:$0xf]
  %v87 = vld [vmem:[%s27 + $0xec] sm:$0xf]
  %v88 = vld [vmem:[%s27 + $0xf0] sm:$0xf]
  %v89 = vld [vmem:[%s27 + $0xf4] sm:$0xf]
  %v90 = vld [vmem:[%s27 + $0xf8] sm:$0xf]
  %v91 = vld [vmem:[%s27 + $0xfc] sm:$0xf]
  %v92 = vld [vmem:[%s27 + $0x100] sm:$0xf]
  %v93 = vld [vmem:[%s27 + $0x104] sm:$0xf]
  %v94 = vld [vmem:[%s27 + $0x108] sm:$0xf]
  %v95 = vld [vmem:[%s27 + $0x10c] sm:$0xf]
  %v96 = vld [vmem:[%s27 + $0x110] sm:$0xf]
  %v97 = vld [vmem:[%s27 + $0x114] sm:$0xf]
  %v98 = vld [vmem:[%s27 + $0x118] sm:$0xf]
  %v99 = vld [vmem:[%s27 + $0x11c] sm:$0xf]
  %v100 = vld [vmem:[%s27 + $0x120] sm:$0xf]
  %v101 = vld [vmem:[%s27 + $0x124] sm:$0xf]
  %v102 = vld [vmem:[%s27 + $0x128] sm:$0xf]
  %v103 = vld [vmem:[%s27 + $0x12c] sm:$0xf]
  %v104 = vld [vmem:[%s27 + $0x130] sm:$0xf]
  %v105 = vld [vmem:[%s27 + $0x134] sm:$0xf]
  %v106 = vld [vmem:[%s27 + $0x138] sm:$0xf]
  %v107 = vld [vmem:[%s27 + $0x13c] sm:$0xf]
  %v108 = vld [vmem:[%s27 + $0x140] sm:$0xf]
  %v109 = vld [vmem:[%s27 + $0x144] sm:$0xf]
  %v110 = vld [vmem:[%s27 + $0x148] sm:$0xf]
  %v111 = vld [vmem:[%s27 + $0x14c] sm:$0xf]
  %v112 = vld [vmem:[%s27 + $0x150] sm:$0xf]
  %v113 = vld [vmem:[%s27 + $0x154] sm:$0xf]
  %v114 = vld [vmem:[%s27 + $0x158] sm:$0xf]
  %v115 = vld [vmem:[%s27 + $0x15c] sm:$0xf]
  %v116 = vld [vmem:[%s27 + $0x160] sm:$0xf]
  %v117 = vld [vmem:[%s27 + $0x164] sm:$0xf]
  %v118 = vld [vmem:[%s27 + $0x168] sm:$0xf]
  %v119 = vld [vmem:[%s27 + $0x16c] sm:$0xf]
  %v120 = vld [vmem:[%s27 + $0x170] sm:$0xf]
  %v121 = vld [vmem:[%s27 + $0x174] sm:$0xf]
  %v122 = vld [vmem:[%s27 + $0x178] sm:$0xf]
  %v123 = vld [vmem:[%s27 + $0x17c] sm:$0xf]
  %v124 = vld [vmem:[%s27 + $0x180] sm:$0xf]
  %v125 = vld [vmem:[%s27 + $0x184] sm:$0xf]
  %v126 = vld [vmem:[%s27 + $0x188] sm:$0xf]
  %v127 = vld [vmem:[%s27 + $0x18c] sm:$0xf]
  %v128 = vld [vmem:[%s27 + $0x190] sm:$0xf]
  %v129 = vld [vmem:[%s27 + $0x194] sm:$0xf]
  %v130 = vld [vmem:[%s27 + $0x198] sm:$0xf]
  %v131 = vld [vmem:[%s27 + $0x19c] sm:$0xf]
  %v132 = vld [vmem:[%s27 + $0x1a0] sm:$0xf]
  %v133 = vld [vmem:[%s27 + $0x1a4] sm:$0xf]
  %v134 = vld [vmem:[%s27 + $0x1a8] sm:$0xf]
  %v135 = vld [vmem:[%s27 + $0x1ac] sm:$0xf]
  %v136 = vld [vmem:[%s27 + $0x1b0] sm:$0xf]
  %v137 = vld [vmem:[%s27 + $0x1b4] sm:$0xf]
  %v138 = vld [vmem:[%s27 + $0x1b8] sm:$0xf]
  %v139 = vld [vmem:[%s27 + $0x1bc] sm:$0xf]
  %v140 = vld [vmem:[%s27 + $0x1c0] sm:$0xf]
  %v141 = vld [vmem:[%s27 + $0x1c4] sm:$0xf]
  %v142 = vld [vmem:[%s27 + $0x1c8] sm:$0xf]
  %v143 = vld [vmem:[%s27 + $0x1cc] sm:$0xf]
  %v144 = vld [vmem:[%s27 + $0x1d0] sm:$0xf]
  %v145 = vld [vmem:[%s27 + $0x1d4] sm:$0xf]
  %v146 = vld [vmem:[%s27 + $0x1d8] sm:$0xf]
  %v147 = vld [vmem:[%s27 + $0x1dc] sm:$0xf]
  %v148 = vld [vmem:[%s27 + $0x1e0] sm:$0xf]
  %v149 = vld [vmem:[%s27 + $0x1e4] sm:$0xf]
  %v150 = vld [vmem:[%s27 + $0x1e8] sm:$0xf]
  %v151 = vld [vmem:[%s27 + $0x1ec] sm:$0xf]
  %v152 = vld [vmem:[%s27 + $0x1f0] sm:$0xf]
  %v153 = vld [vmem:[%s27 + $0x1f4] sm:$0xf]
  %v154 = vld [vmem:[%s27 + $0x1f8] sm:$0xf]
  %v155 = vld [vmem:[%s27 + $0x1fc] sm:$0xf]
  %v156 = vld [vmem:[#allocation2] sm:$0xff]
  %v157 = vld [vmem:[#allocation2 + $0x8] sm:$0xff]
  %v158 = vld [vmem:[%s0] sm:$0xff]
  %v159 = vld [vmem:[%s0 + $0x8] sm:$0xff]
  %v160 = vld [vmem:[%s0 + $0x10] sm:$0xff]
  %v161 = vld [vmem:[%s0 + $0x18] sm:$0xff]
  %v162 = vld [vmem:[%s0 + $0x20] sm:$0xff]
  %v163 = vld [vmem:[%s0 + $0x28] sm:$0xff]
  %v164 = vld [vmem:[%s0 + $0x30] sm:$0xff]
  %v165 = vld [vmem:[%s0 + $0x38] sm:$0xff]
  %v166 = vld [vmem:[%s0 + $0x40] sm:$0xff]
  %v167 = vld [vmem:[%s0 + $0x48] sm:$0xff]
  %v168 = vld [vmem:[%s0 + $0x50] sm:$0xff]
  %v169 = vld [vmem:[%s0 + $0x58] sm:$0xff]
  %v170 = vld [vmem:[%s0 + $0x60] sm:$0xff]
  %v171 = vld [vmem:[%s0 + $0x68] sm:$0xff]
  %v172 = vld [vmem:[%s0 + $0x70] sm:$0xff]
  %v173 = vld [vmem:[%s0 + $0x78] sm:$0xff]
  %v174 = vpack.c.bf16 %v166, %v158
  %v175 = vpack.c.bf16 %v167, %v159
  %v176 = vpack.c.bf16 %v168, %v160
  %v177 = vpack.c.bf16 %v169, %v161
  %v178 = vpack.c.bf16 %v170, %v162
  %v179 = vpack.c.bf16 %v171, %v163
  %v180 = vpack.c.bf16 %v172, %v164
  %v181 = vpack.c.bf16 %v173, %v165
  %v310 = vunpack.c.l.b16 %v28
  %v311 = vunpack.c.l.b16 %v29
  %v312 = vunpack.c.l.b16 %v30
  %v313 = vunpack.c.l.b16 %v31
  %v314 = vunpack.c.l.b16 %v32
  %v315 = vunpack.c.l.b16 %v33
  %v316 = vunpack.c.l.b16 %v34
  %v317 = vunpack.c.l.b16 %v35
  %v318 = vunpack.c.l.b16 %v36
  %v319 = vunpack.c.l.b16 %v37
  %v320 = vunpack.c.l.b16 %v38
  %v321 = vunpack.c.l.b16 %v39
  %v322 = vunpack.c.l.b16 %v40
  %v323 = vunpack.c.l.b16 %v41
  %v324 = vunpack.c.l.b16 %v42
  %v325 = vunpack.c.l.b16 %v43
  %v326 = vunpack.c.l.b16 %v44
  %v327 = vunpack.c.l.b16 %v45
  %v328 = vunpack.c.l.b16 %v46
  %v329 = vunpack.c.l.b16 %v47
  %v330 = vunpack.c.l.b16 %v48
  %v331 = vunpack.c.l.b16 %v49
  %v332 = vunpack.c.l.b16 %v50
  %v333 = vunpack.c.l.b16 %v51
  %v334 = vunpack.c.l.b16 %v52
  %v335 = vunpack.c.l.b16 %v53
  %v336 = vunpack.c.l.b16 %v54
  %v337 = vunpack.c.l.b16 %v55
  %v338 = vunpack.c.l.b16 %v56
  %v339 = vunpack.c.l.b16 %v57
  %v340 = vunpack.c.l.b16 %v58
  %v341 = vunpack.c.l.b16 %v59
  %v342 = vunpack.c.l.b16 %v60
  %v343 = vunpack.c.l.b16 %v61
  %v344 = vunpack.c.l.b16 %v62
  %v345 = vunpack.c.l.b16 %v63
  %v346 = vunpack.c.l.b16 %v64
  %v347 = vunpack.c.l.b16 %v65
  %v348 = vunpack.c.l.b16 %v66
  %v349 = vunpack.c.l.b16 %v67
  %v350 = vunpack.c.l.b16 %v68
  %v351 = vunpack.c.l.b16 %v69
  %v352 = vunpack.c.l.b16 %v70
  %v353 = vunpack.c.l.b16 %v71
  %v354 = vunpack.c.l.b16 %v72
  %v355 = vunpack.c.l.b16 %v73
  %v356 = vunpack.c.l.b16 %v74
  %v357 = vunpack.c.l.b16 %v75
  %v358 = vunpack.c.l.b16 %v76
  %v359 = vunpack.c.l.b16 %v77
  %v360 = vunpack.c.l.b16 %v78
  %v361 = vunpack.c.l.b16 %v79
  %v362 = vunpack.c.l.b16 %v80
  %v363 = vunpack.c.l.b16 %v81
  %v364 = vunpack.c.l.b16 %v82
  %v365 = vunpack.c.l.b16 %v83
  %v366 = vunpack.c.l.b16 %v84
  %v367 = vunpack.c.l.b16 %v85
  %v368 = vunpack.c.l.b16 %v86
  %v369 = vunpack.c.l.b16 %v87
  %v370 = vunpack.c.l.b16 %v88
  %v371 = vunpack.c.l.b16 %v89
  %v372 = vunpack.c.l.b16 %v90
  %v373 = vunpack.c.l.b16 %v91
  %v374 = vunpack.c.l.b16 %v92
  %v375 = vunpack.c.l.b16 %v93
  %v376 = vunpack.c.l.b16 %v94
  %v377 = vunpack.c.l.b16 %v95
  %v378 = vunpack.c.l.b16 %v96
  %v379 = vunpack.c.l.b16 %v97
  %v380 = vunpack.c.l.b16 %v98
  %v381 = vunpack.c.l.b16 %v99
  %v382 = vunpack.c.l.b16 %v100
  %v383 = vunpack.c.l.b16 %v101
  %v384 = vunpack.c.l.b16 %v102
  %v385 = vunpack.c.l.b16 %v103
  %v386 = vunpack.c.l.b16 %v104
  %v387 = vunpack.c.l.b16 %v105
  %v388 = vunpack.c.l.b16 %v106
  %v389 = vunpack.c.l.b16 %v107
  %v390 = vunpack.c.l.b16 %v108
  %v391 = vunpack.c.l.b16 %v109
  %v392 = vunpack.c.l.b16 %v110
  %v393 = vunpack.c.l.b16 %v111
  %v394 = vunpack.c.l.b16 %v112
  %v395 = vunpack.c.l.b16 %v113
  %v396 = vunpack.c.l.b16 %v114
  %v397 = vunpack.c.l.b16 %v115
  %v398 = vunpack.c.l.b16 %v116
  %v399 = vunpack.c.l.b16 %v117
  %v400 = vunpack.c.l.b16 %v118
  %v401 = vunpack.c.l.b16 %v119
  %v402 = vunpack.c.l.b16 %v120
  %v403 = vunpack.c.l.b16 %v121
  %v404 = vunpack.c.l.b16 %v122
  %v405 = vunpack.c.l.b16 %v123
  %v406 = vunpack.c.l.b16 %v124
  %v407 = vunpack.c.l.b16 %v125
  %v408 = vunpack.c.l.b16 %v126
  %v409 = vunpack.c.l.b16 %v127
  %v410 = vunpack.c.l.b16 %v128
  %v411 = vunpack.c.l.b16 %v129
  %v412 = vunpack.c.l.b16 %v130
  %v413 = vunpack.c.l.b16 %v131
  %v414 = vunpack.c.l.b16 %v132
  %v415 = vunpack.c.l.b16 %v133
  %v416 = vunpack.c.l.b16 %v134
  %v417 = vunpack.c.l.b16 %v135
  %v418 = vunpack.c.l.b16 %v136
  %v419 = vunpack.c.l.b16 %v137
  %v420 = vunpack.c.l.b16 %v138
  %v421 = vunpack.c.l.b16 %v139
  %v422 = vunpack.c.l.b16 %v140
  %v423 = vunpack.c.l.b16 %v141
  %v424 = vunpack.c.l.b16 %v142
  %v425 = vunpack.c.l.b16 %v143
  %v426 = vunpack.c.l.b16 %v144
  %v427 = vunpack.c.l.b16 %v145
  %v428 = vunpack.c.l.b16 %v146
  %v429 = vunpack.c.l.b16 %v147
  %v430 = vunpack.c.l.b16 %v148
  %v431 = vunpack.c.l.b16 %v149
  %v432 = vunpack.c.l.b16 %v150
  %v433 = vunpack.c.l.b16 %v151
  %v434 = vunpack.c.l.b16 %v152
  %v435 = vunpack.c.l.b16 %v153
  %v436 = vunpack.c.l.b16 %v154
  %v437 = vunpack.c.l.b16 %v155
  %v438 = vpack.c.b16 %v311, %v310
  %v439 = vpack.c.b16 %v313, %v312
  %v440 = vpack.c.b16 %v315, %v314
  %v441 = vpack.c.b16 %v317, %v316
  %v442 = vpack.c.b16 %v319, %v318
  %v443 = vpack.c.b16 %v321, %v320
  %v444 = vpack.c.b16 %v323, %v322
  %v445 = vpack.c.b16 %v325, %v324
  %v446 = vpack.c.b16 %v327, %v326
  %v447 = vpack.c.b16 %v329, %v328
  %v448 = vpack.c.b16 %v331, %v330
  %v449 = vpack.c.b16 %v333, %v332
  %v450 = vpack.c.b16 %v335, %v334
  %v451 = vpack.c.b16 %v337, %v336
  %v452 = vpack.c.b16 %v339, %v338
  %v453 = vpack.c.b16 %v341, %v340
  %v454 = vpack.c.b16 %v343, %v342
  %v455 = vpack.c.b16 %v345, %v344
  %v456 = vpack.c.b16 %v347, %v346
  %v457 = vpack.c.b16 %v349, %v348
  %v458 = vpack.c.b16 %v351, %v350
  %v459 = vpack.c.b16 %v353, %v352
  %v460 = vpack.c.b16 %v355, %v354
  %v461 = vpack.c.b16 %v357, %v356
  %v462 = vpack.c.b16 %v359, %v358
  %v463 = vpack.c.b16 %v361, %v360
  %v464 = vpack.c.b16 %v363, %v362
  %v465 = vpack.c.b16 %v365, %v364
  %v466 = vpack.c.b16 %v367, %v366
  %v467 = vpack.c.b16 %v369, %v368
  %v468 = vpack.c.b16 %v371, %v370
  %v469 = vpack.c.b16 %v373, %v372
  %v470 = vpack.c.b16 %v375, %v374
  %v471 = vpack.c.b16 %v377, %v376
  %v472 = vpack.c.b16 %v379, %v378
  %v473 = vpack.c.b16 %v381, %v380
  %v474 = vpack.c.b16 %v383, %v382
  %v475 = vpack.c.b16 %v385, %v384
  %v476 = vpack.c.b16 %v387, %v386
  %v477 = vpack.c.b16 %v389, %v388
  %v478 = vpack.c.b16 %v391, %v390
  %v479 = vpack.c.b16 %v393, %v392
  %v480 = vpack.c.b16 %v395, %v394
  %v481 = vpack.c.b16 %v397, %v396
  %v482 = vpack.c.b16 %v399, %v398
  %v483 = vpack.c.b16 %v401, %v400
  %v484 = vpack.c.b16 %v403, %v402
  %v485 = vpack.c.b16 %v405, %v404
  %v486 = vpack.c.b16 %v407, %v406
  %v487 = vpack.c.b16 %v409, %v408
  %v488 = vpack.c.b16 %v411, %v410
  %v489 = vpack.c.b16 %v413, %v412
  %v490 = vpack.c.b16 %v415, %v414
  %v491 = vpack.c.b16 %v417, %v416
  %v492 = vpack.c.b16 %v419, %v418
  %v493 = vpack.c.b16 %v421, %v420
  %v494 = vpack.c.b16 %v423, %v422
  %v495 = vpack.c.b16 %v425, %v424
  %v496 = vpack.c.b16 %v427, %v426
  %v497 = vpack.c.b16 %v429, %v428
  %v498 = vpack.c.b16 %v431, %v430
  %v499 = vpack.c.b16 %v433, %v432
  %v500 = vpack.c.b16 %v435, %v434
  %v501 = vpack.c.b16 %v437, %v436
  %566 = vmatprep.subr.bf16.mxu0 0
  %567 = vmatpush1.bf16.msra.mxu0 %v445
  %568 = vmatprep.subr.bf16.mxu0 0
  %569 = vmatpush1.bf16.msra.mxu0 %v444
  %570 = vmatprep.subr.bf16.mxu0 0
  %571 = vmatpush1.bf16.msra.mxu0 %v443
  %572 = vmatprep.subr.bf16.mxu0 0
  %573 = vmatpush1.bf16.msra.mxu0 %v442
  %574 = vmatprep.subr.bf16.mxu0 0
  %575 = vmatpush1.bf16.msra.mxu0 %v441
  %576 = vmatprep.subr.bf16.mxu0 0
  %577 = vmatpush1.bf16.msra.mxu0 %v440
  %578 = vmatprep.subr.bf16.mxu0 0
  %579 = vmatpush1.bf16.msra.mxu0 %v439
  %580 = vmatprep.subr.bf16.mxu0 0
  %581 = vmatpush1.bf16.msra.mxu0 %v438
  %582 = vmatprep.subr.bf16.mxu0 0
  %583 = vmatpush2.bf16.msra.mxu0 %v453
  %584 = vmatprep.subr.bf16.mxu0 0
  %585 = vmatpush2.bf16.msra.mxu0 %v452
  %586 = vmatprep.subr.bf16.mxu0 0
  %587 = vmatpush2.bf16.msra.mxu0 %v451
  %588 = vmatprep.subr.bf16.mxu0 0
  %589 = vmatpush2.bf16.msra.mxu0 %v450
  %590 = vmatprep.subr.bf16.mxu0 0
  %591 = vmatpush2.bf16.msra.mxu0 %v449
  %592 = vmatprep.subr.bf16.mxu0 0
  %593 = vmatpush2.bf16.msra.mxu0 %v448
  %594 = vmatprep.subr.bf16.mxu0 0
  %595 = vmatpush2.bf16.msra.mxu0 %v447
  %596 = vmatprep.subr.bf16.mxu0 0
  %597 = vmatpush2.bf16.msra.mxu0 %v446
  %598 = vmatprep.mubr.bf16.mxu0 %v175
  %599 = vmatmul.mubr.bf16.gmra.mxu0 %v174
  %v600 = vpop.f32.mrf.mxu0
  %v601 = vadd.f32 0.0, %v600
  %v602 = vpop.f32.mrf.mxu0
  %v603 = vpop.f32.mrf.mxu0
  %v604 = vadd.f32 0.0, %v603
  %v605 = vpop.f32.mrf.mxu0
  %606 = vdwg.mxu0
  %607 = vmatprep.subr.bf16.mxu0 0
  %608 = vmatpush1.bf16.msra.mxu0 %v461
  %609 = vmatprep.subr.bf16.mxu0 0
  %610 = vmatpush1.bf16.msra.mxu0 %v460
  %611 = vmatprep.subr.bf16.mxu0 0
  %612 = vmatpush1.bf16.msra.mxu0 %v459
  %613 = vmatprep.subr.bf16.mxu0 0
  %614 = vmatpush1.bf16.msra.mxu0 %v458
  %615 = vmatprep.subr.bf16.mxu0 0
  %616 = vmatpush1.bf16.msra.mxu0 %v457
  %617 = vmatprep.subr.bf16.mxu0 0
  %618 = vmatpush1.bf16.msra.mxu0 %v456
  %619 = vmatprep.subr.bf16.mxu0 0
  %620 = vmatpush1.bf16.msra.mxu0 %v455
  %621 = vmatprep.subr.bf16.mxu0 0
  %622 = vmatpush1.bf16.msra.mxu0 %v454
  %623 = vmatprep.subr.bf16.mxu0 0
  %624 = vmatpush2.bf16.msra.mxu0 %v469
  %625 = vmatprep.subr.bf16.mxu0 0
  %626 = vmatpush2.bf16.msra.mxu0 %v468
  %627 = vmatprep.subr.bf16.mxu0 0
  %628 = vmatpush2.bf16.msra.mxu0 %v467
  %629 = vmatprep.subr.bf16.mxu0 0
  %630 = vmatpush2.bf16.msra.mxu0 %v466
  %631 = vmatprep.subr.bf16.mxu0 0
  %632 = vmatpush2.bf16.msra.mxu0 %v465
  %633 = vmatprep.subr.bf16.mxu0 0
  %634 = vmatpush2.bf16.msra.mxu0 %v464
  %635 = vmatprep.subr.bf16.mxu0 0
  %636 = vmatpush2.bf16.msra.mxu0 %v463
  %637 = vmatprep.subr.bf16.mxu0 0
  %638 = vmatpush2.bf16.msra.mxu0 %v462
  %639 = vmatprep.mubr.bf16.mxu0 %v177
  %640 = vmatmul.mubr.bf16.gmra.mxu0 %v176
  %v641 = vpop.f32.mrf.mxu0
  %v642 = vadd.f32 %v601, %v641
  %v643 = vpop.f32.mrf.mxu0
  %v644 = vpop.f32.mrf.mxu0
  %v645 = vadd.f32 %v604, %v644
  %v646 = vpop.f32.mrf.mxu0
  %647 = vdwg.mxu0
  %648 = vmatprep.subr.bf16.mxu0 0
  %649 = vmatpush1.bf16.msra.mxu0 %v477
  %650 = vmatprep.subr.bf16.mxu0 0
  %651 = vmatpush1.bf16.msra.mxu0 %v476
  %652 = vmatprep.subr.bf16.mxu0 0
  %653 = vmatpush1.bf16.msra.mxu0 %v475
  %654 = vmatprep.subr.bf16.mxu0 0
  %655 = vmatpush1.bf16.msra.mxu0 %v474
  %656 = vmatprep.subr.bf16.mxu0 0
  %657 = vmatpush1.bf16.msra.mxu0 %v473
  %658 = vmatprep.subr.bf16.mxu0 0
  %659 = vmatpush1.bf16.msra.mxu0 %v472
  %660 = vmatprep.subr.bf16.mxu0 0
  %661 = vmatpush1.bf16.msra.mxu0 %v471
  %662 = vmatprep.subr.bf16.mxu0 0
  %663 = vmatpush1.bf16.msra.mxu0 %v470
  %664 = vmatprep.subr.bf16.mxu0 0
  %665 = vmatpush2.bf16.msra.mxu0 %v485
  %666 = vmatprep.subr.bf16.mxu0 0
  %667 = vmatpush2.bf16.msra.mxu0 %v484
  %668 = vmatprep.subr.bf16.mxu0 0
  %669 = vmatpush2.bf16.msra.mxu0 %v483
  %670 = vmatprep.subr.bf16.mxu0 0
  %671 = vmatpush2.bf16.msra.mxu0 %v482
  %672 = vmatprep.subr.bf16.mxu0 0
  %673 = vmatpush2.bf16.msra.mxu0 %v481
  %674 = vmatprep.subr.bf16.mxu0 0
  %675 = vmatpush2.bf16.msra.mxu0 %v480
  %676 = vmatprep.subr.bf16.mxu0 0
  %677 = vmatpush2.bf16.msra.mxu0 %v479
  %678 = vmatprep.subr.bf16.mxu0 0
  %679 = vmatpush2.bf16.msra.mxu0 %v478
  %680 = vmatprep.mubr.bf16.mxu0 %v179
  %681 = vmatmul.mubr.bf16.gmra.mxu0 %v178
  %v682 = vpop.f32.mrf.mxu0
  %v683 = vadd.f32 %v642, %v682
  %v684 = vpop.f32.mrf.mxu0
  %v685 = vpop.f32.mrf.mxu0
  %v686 = vadd.f32 %v645, %v685
  %v687 = vpop.f32.mrf.mxu0
  %688 = vdwg.mxu0
  %689 = vmatprep.subr.bf16.mxu0 0
  %690 = vmatpush1.bf16.msra.mxu0 %v493
  %691 = vmatprep.subr.bf16.mxu0 0
  %692 = vmatpush1.bf16.msra.mxu0 %v492
  %693 = vmatprep.subr.bf16.mxu0 0
  %694 = vmatpush1.bf16.msra.mxu0 %v491
  %695 = vmatprep.subr.bf16.mxu0 0
  %696 = vmatpush1.bf16.msra.mxu0 %v490
  %697 = vmatprep.subr.bf16.mxu0 0
  %698 = vmatpush1.bf16.msra.mxu0 %v489
  %699 = vmatprep.subr.bf16.mxu0 0
  %700 = vmatpush1.bf16.msra.mxu0 %v488
  %701 = vmatprep.subr.bf16.mxu0 0
  %702 = vmatpush1.bf16.msra.mxu0 %v487
  %703 = vmatprep.subr.bf16.mxu0 0
  %704 = vmatpush1.bf16.msra.mxu0 %v486
  %705 = vmatprep.subr.bf16.mxu0 0
  %706 = vmatpush2.bf16.msra.mxu0 %v501
  %707 = vmatprep.subr.bf16.mxu0 0
  %708 = vmatpush2.bf16.msra.mxu0 %v500
  %709 = vmatprep.subr.bf16.mxu0 0
  %710 = vmatpush2.bf16.msra.mxu0 %v499
  %711 = vmatprep.subr.bf16.mxu0 0
  %712 = vmatpush2.bf16.msra.mxu0 %v498
  %713 = vmatprep.subr.bf16.mxu0 0
  %714 = vmatpush2.bf16.msra.mxu0 %v497
  %715 = vmatprep.subr.bf16.mxu0 0
  %716 = vmatpush2.bf16.msra.mxu0 %v496
  %717 = vmatprep.subr.bf16.mxu0 0
  %718 = vmatpush2.bf16.msra.mxu0 %v495
  %719 = vmatprep.subr.bf16.mxu0 0
  %720 = vmatpush2.bf16.msra.mxu0 %v494
  %721 = vmatprep.mubr.bf16.mxu0 %v181
  %722 = vmatmul.mubr.bf16.gmra.mxu0 %v180
  %v723 = vpop.f32.mrf.mxu0
  %v724 = vadd.f32 %v683, %v723
  %v725 = vpop.f32.mrf.mxu0
  %v726 = vpop.f32.mrf.mxu0
  %v727 = vadd.f32 %v686, %v726
  %v728 = vpop.f32.mrf.mxu0
  %729 = vdwg.mxu0
  %v730 = vadd.f32 %v156, %v724
  %v731 = vadd.f32 %v157, %v727
  %732 = vst [vmem:[#allocation2] sm:$0xff] %v730
  %733 = vst [vmem:[#allocation2 + $0x8] sm:$0xff] %v731
  // Predicated region
  $region18: #{aeim_forward.2} parent=0 // pred_check
    %p734 = pneg %p17
  $region19: #{aeim_forward.2} parent=0 // pred_check_branch
    %736 = sbr.rel (%p734) target = $region21
  $region20: #{aeim_forward.2} parent=0 // pred_region
    %v737 = vld [vmem:[#allocation2] sm:$0xff]
    %v738 = vld [vmem:[#allocation2 + $0x8] sm:$0xff]
    %v739 = vld [vmem:[%s2] sm:$0x1]
    %v741 = vlaneseq
    %v742 = vshrl.u32 %v741, 7
    %v743 = vsub.s32 0, %v742
    %v744 = vrot.slane %v739, %v743
    %v746 = vadd.f32 %v737, %v744
    %v747 = vadd.f32 %v738, %v744
    %v748 = vtanh.pop %v746
    %v749 = vtanh.pop %v747
    %750 = vst [vmem:[%s3] sm:$0xff] %v748
    %751 = vst [vmem:[%s3 + $0x8] sm:$0xff] %v749
    %v752 = vpack.c.bf16 %v749, %v748
    %v754 = vunpack.c.l.b16 %v752
    %v755 = vunpack.c.h.b16 %v752
    %v756 = vpack.c.b16 %v754, %v754
    %v757 = vpack.c.b16 %v755, %v755
    %760 = vst [vmem:[%s4] sm:$0xf] %v756
    %761 = vst [vmem:[%s4 + $0x4] sm:$0xf] %v757
  $region21: #{aeim_forward.2} parent=0 // pred_fallthru
    _
  // Predicated region
  $region22: #{aeim_forward.2} parent=0 // pred_check
    _
  $region23: #{aeim_forward.2} parent=0 // pred_check_branch
    %763 = sbr.rel (0) target = $region25
  $region24: #{aeim_forward.2} parent=0 // pred_region
    _
  $region25: #{aeim_forward.2} parent=0 // pred_fallthru
    _
  // Predicated region
  $region26: #{aeim_forward.2} parent=0 // pred_check
    _
  $region27: #{aeim_forward.2} parent=0 // pred_check_branch
    %765 = sbr.rel (0) target = $region29
  $region28: #{aeim_forward.2} parent=0 // pred_region
    _
  $region29: #{aeim_forward.2} parent=0 // pred_fallthru
    _
  // Predicated region
  $region30: #{aeim_forward.2} parent=0 // pred_check
    _
  $region31: #{aeim_forward.2} parent=0 // pred_check_branch
    %767 = sbr.rel (0) target = $region33
  $region32: #{aeim_forward.2} parent=0 // pred_region
    _
  $region33: #{aeim_forward.2} parent=0 // pred_fallthru
    _
  // Predicated region
  $region34: #{aeim_forward.2} parent=0 // pred_check
    _
  $region35: #{aeim_forward.2} parent=0 // pred_check_branch
    %769 = sbr.rel (0) target = $region37
  $region36: #{aeim_forward.2} parent=0 // pred_region
    _
  $region37: #{aeim_forward.2} parent=0 // pred_fallthru
    _

</llo_original>
